<compile_context>
chip_gen: v5e
topology: v5e:2x2
jax: 0.10.0
libtpu: 0.0.40
codegen_flags: <defaults>
</compile_context>

<pallas_src>
import jax
import jax.numpy as jnp
from jax import lax
from jax.experimental import pallas as pl
from jax.experimental.pallas import tpu as pltpu

HIDDEN_SIZE = 100
VOCAB = {'Привет': 0, 'Как': 1, 'дела': 2, 'Хорошо': 3, 'спасибо': 4}
INPUT_SIZE = len(VOCAB)    # 5
OUTPUT_SIZE = len(VOCAB)   # 5

LANE = 128                 # padded hidden / output width (one vreg row)


def rnn_kernel(seq_ref, emb_ref, w_ih_t_ref, w_hh_t_ref, bias_ref,
               w_fc_t_ref, b_fc_ref, out_ref, x_all_ref, h_all_ref):
    """Single-invocation kernel (no grid); everything resident in VMEM.

    seq_ref   : SMEM [L]        int32 word indices
    emb_ref   : VMEM [8, 128]   zero-padded embedding table
    w_ih_t_ref: VMEM [128, 128] W_ih^T, zero-padded
    w_hh_t_ref: VMEM [128, 128] W_hh^T, zero-padded
    bias_ref  : VMEM [1, 128]   b_ih + b_hh, zero-padded
    w_fc_t_ref: VMEM [128, 128] fc_w^T, zero-padded
    b_fc_ref  : VMEM [1, 128]   fc bias, zero-padded
    out_ref   : VMEM [L, 128]   padded logits (lane-dense store)
    x_all_ref : VMEM [L, 128]   scratch: gathered embeddings
    h_all_ref : VMEM [L, 128]   scratch: all hidden states
    """
    L, HP = x_all_ref.shape

    # 1) Fused embedding gather: one dynamic-sublane row copy per timestep.
    for t in range(L):
        idx = seq_ref[t]
        x_all_ref[pl.ds(t, 1), :] = emb_ref[pl.ds(idx, 1), :]

    # 2) Hoisted input projection + combined bias: ONE (L,HP)x(HP,HP) matmul.
    pre_x = (jnp.dot(x_all_ref[...], w_ih_t_ref[...],
                     preferred_element_type=jnp.float32)
             + bias_ref[...])                               # (L, HP)

    # 3) Serial tanh recurrence, fully unrolled (L is small & static).
    #    Only one (1,HP)x(HP,HP) matmul remains on the critical path per step.
    w_hh_t = w_hh_t_ref[...]
    h = jnp.zeros((1, HP), jnp.float32)
    for t in range(L):
        h = jnp.tanh(pre_x[t:t + 1, :]
                     + jnp.dot(h, w_hh_t, preferred_element_type=jnp.float32))
        h_all_ref[pl.ds(t, 1), :] = h

    # 4) Output projection over all timesteps in one MXU matmul; lane-dense.
    out_ref[...] = (jnp.dot(h_all_ref[...], w_fc_t_ref[...],
                            preferred_element_type=jnp.float32)
                    + b_fc_ref[...])


def _pad2(x, rows, cols):
    out = jnp.zeros((rows, cols), jnp.float32)
    return out.at[:x.shape[0], :x.shape[1]].set(x.astype(jnp.float32))


def prepare_params(params, lane=LANE):
    """One-time weight prep: transpose + zero-pad to 128 lanes (done outside
    the hot path, exactly once)."""
    H = params["w_hh"].shape[0]
    V = params["fc_w"].shape[0]
    E = params["embedding"].shape[0]
    e_rows = ((E + 7) // 8) * 8                       # sublane-align rows
    bias = jnp.zeros((1, lane), jnp.float32).at[0, :H].set(
        (params["b_ih"] + params["b_hh"]).astype(jnp.float32))
    b_fc = jnp.zeros((1, lane), jnp.float32).at[0, :V].set(
        params["fc_b"].astype(jnp.float32))
    return {
        "emb":    _pad2(params["embedding"], e_rows, lane),   # [8, 128]
        "w_ih_t": _pad2(params["w_ih"].T, lane, lane),         # [128, 128]
        "w_hh_t": _pad2(params["w_hh"].T, lane, lane),         # [128, 128]
        "bias":   bias,                                        # [1, 128]
        "w_fc_t": _pad2(params["fc_w"].T, lane, lane),         # [128, 128]
        "b_fc":   b_fc,                                        # [1, 128]
    }


@jax.jit
def rnn_forward(input_seq, padded):
    """input_seq: int32 [L].  Returns logits [L, OUTPUT_SIZE] (f32)."""
    L = input_seq.shape[0]
    HP = padded["w_hh_t"].shape[0]
    VP = padded["w_fc_t"].shape[1]

    smem = pl.BlockSpec(memory_space=pltpu.MemorySpace.SMEM)
    vmem = pl.BlockSpec(memory_space=pltpu.MemorySpace.VMEM)

    logits_padded = pl.pallas_call(
        rnn_kernel,
        out_shape=jax.ShapeDtypeStruct((L, VP), jnp.float32),
        in_specs=[smem] + [vmem] * 6,
        out_specs=vmem,
        scratch_shapes=[pltpu.VMEM((L, HP), jnp.float32),   # x_all
                        pltpu.VMEM((L, HP), jnp.float32)],  # h_all
    )(
        input_seq.astype(jnp.int32),
        padded["emb"], padded["w_ih_t"], padded["w_hh_t"],
        padded["bias"], padded["w_fc_t"], padded["b_fc"],
    )
    # Padded lanes 5..127 are exactly zero (zero-padded weights/biases), so
    # this slice reproduces the un-padded logits bit-for-bit.
    return logits_padded[:, :OUTPUT_SIZE]


def init_params(key, input_size, hidden_size, output_size):
    """Deterministic init mimicking PyTorch defaults (shapes identical)."""
    ks = jax.random.split(key, 7)
    k_rnn = 1.0 / jnp.sqrt(hidden_size)
    k_fc = 1.0 / jnp.sqrt(hidden_size)
    u = lambda k, shape, lim: jax.random.uniform(
        k, shape, jnp.float32, minval=-lim, maxval=lim)
    return {
        "embedding": jax.random.normal(ks[0], (input_size, hidden_size),
                                       jnp.float32),
        "w_ih": u(ks[1], (hidden_size, hidden_size), k_rnn),
        "w_hh": u(ks[2], (hidden_size, hidden_size), k_rnn),
        "b_ih": u(ks[3], (hidden_size,), k_rnn),
        "b_hh": u(ks[4], (hidden_size,), k_rnn),
        "fc_w": u(ks[5], (output_size, hidden_size), k_fc),
        "fc_b": u(ks[6], (output_size,), k_fc),
    }


def rnn_forward_ref(input_seq, params):
    """Pure-JAX reference mirroring the PyTorch forward."""
    embed = jnp.take(params["embedding"], input_seq, axis=0)  # [L, H]

    def step(h, x_t):
        h_new = jnp.tanh(x_t @ params["w_ih"].T + params["b_ih"]
                         + h @ params["w_hh"].T + params["b_hh"])
        return h_new, h_new

    h0 = jnp.zeros((params["w_hh"].shape[0],), jnp.float32)
    _, hs = lax.scan(step, h0, embed)                          # [L, H]
    return hs @ params["fc_w"].T + params["fc_b"]              # [L, V]


if __name__ == "__main__":
    key = jax.random.PRNGKey(0)
    k_param, k_seq = jax.random.split(key)

    params = init_params(k_param, INPUT_SIZE, HIDDEN_SIZE, OUTPUT_SIZE)
    padded = prepare_params(params)          # one-time transpose + pad

    seq_len = 8
    input_seq = jax.random.randint(k_seq, (seq_len,), 0, INPUT_SIZE,
                                   dtype=jnp.int32)

    logits = rnn_forward(input_seq, padded)
    jax.block_until_ready(logits)

    ref = rnn_forward_ref(input_seq, params)
    assert logits.shape == (seq_len, OUTPUT_SIZE)
    assert jnp.allclose(logits, ref, atol=1e-4, rtol=1e-4), "mismatch vs ref"

    print("KERNEL_OK")
</pallas_src>

<mosaic_0001>
module attributes {stable_mosaic.version = 11 : i64} {
  func.func @rnn_kernel(%arg0: memref<8xi32, #tpu.memory_space<smem>>, %arg1: memref<8x128xf32, #tpu.memory_space<vmem>>, %arg2: memref<128x128xf32, #tpu.memory_space<vmem>>, %arg3: memref<128x128xf32, #tpu.memory_space<vmem>>, %arg4: memref<1x128xf32, #tpu.memory_space<vmem>>, %arg5: memref<128x128xf32, #tpu.memory_space<vmem>>, %arg6: memref<1x128xf32, #tpu.memory_space<vmem>>, %arg7: memref<8x128xf32, #tpu.memory_space<vmem>>, %arg8: memref<8x128xf32, #tpu.memory_space<vmem>>, %arg9: memref<8x128xf32, #tpu.memory_space<vmem>>) attributes {dimension_semantics = [], scalar_prefetch = 0 : i64, scratch_operands = 2 : i64, tpu.core_type = #tpu.core_type<tc>} {
    %c0 = arith.constant 0 : index
    %0 = memref.load %arg0[%c0] : memref<8xi32, #tpu.memory_space<smem>>
    %1 = arith.index_cast %0 : i32 to index
    %c0_0 = arith.constant 0 : index
    %2 = vector.load %arg1[%1, %c0_0] : memref<8x128xf32, #tpu.memory_space<vmem>>, vector<1x128xf32>
    %c0_1 = arith.constant 0 : index
    %c0_2 = arith.constant 0 : index
    %3 = vector.load %arg8[%c0_1, %c0_2] : memref<8x128xf32, #tpu.memory_space<vmem>>, vector<1x128xf32>
    tpu.vector_store %arg8[%c0_1, %c0_2], %2 {strides = array<i32>} : memref<8x128xf32, #tpu.memory_space<vmem>>, vector<1x128xf32>,
    %c1 = arith.constant 1 : index
    %4 = memref.load %arg0[%c1] : memref<8xi32, #tpu.memory_space<smem>>
    %5 = arith.index_cast %4 : i32 to index
    %c0_3 = arith.constant 0 : index
    %6 = vector.load %arg1[%5, %c0_3] : memref<8x128xf32, #tpu.memory_space<vmem>>, vector<1x128xf32>
    %c1_4 = arith.constant 1 : index
    %c0_5 = arith.constant 0 : index
    %7 = vector.load %arg8[%c1_4, %c0_5] : memref<8x128xf32, #tpu.memory_space<vmem>>, vector<1x128xf32>
    tpu.vector_store %arg8[%c1_4, %c0_5], %6 {strides = array<i32>} : memref<8x128xf32, #tpu.memory_space<vmem>>, vector<1x128xf32>,
    %c2 = arith.constant 2 : index
    %8 = memref.load %arg0[%c2] : memref<8xi32, #tpu.memory_space<smem>>
    %9 = arith.index_cast %8 : i32 to index
    %c0_6 = arith.constant 0 : index
    %10 = vector.load %arg1[%9, %c0_6] : memref<8x128xf32, #tpu.memory_space<vmem>>, vector<1x128xf32>
    %c2_7 = arith.constant 2 : index
    %c0_8 = arith.constant 0 : index
    %11 = vector.load %arg8[%c2_7, %c0_8] : memref<8x128xf32, #tpu.memory_space<vmem>>, vector<1x128xf32>
    tpu.vector_store %arg8[%c2_7, %c0_8], %10 {strides = array<i32>} : memref<8x128xf32, #tpu.memory_space<vmem>>, vector<1x128xf32>,
    %c3 = arith.constant 3 : index
    %12 = memref.load %arg0[%c3] : memref<8xi32, #tpu.memory_space<smem>>
    %13 = arith.index_cast %12 : i32 to index
    %c0_9 = arith.constant 0 : index
    %14 = vector.load %arg1[%13, %c0_9] : memref<8x128xf32, #tpu.memory_space<vmem>>, vector<1x128xf32>
    %c3_10 = arith.constant 3 : index
    %c0_11 = arith.constant 0 : index
    %15 = vector.load %arg8[%c3_10, %c0_11] : memref<8x128xf32, #tpu.memory_space<vmem>>, vector<1x128xf32>
    tpu.vector_store %arg8[%c3_10, %c0_11], %14 {strides = array<i32>} : memref<8x128xf32, #tpu.memory_space<vmem>>, vector<1x128xf32>,
    %c4 = arith.constant 4 : index
    %16 = memref.load %arg0[%c4] : memref<8xi32, #tpu.memory_space<smem>>
    %17 = arith.index_cast %16 : i32 to index
    %c0_12 = arith.constant 0 : index
    %18 = vector.load %arg1[%17, %c0_12] : memref<8x128xf32, #tpu.memory_space<vmem>>, vector<1x128xf32>
    %c4_13 = arith.constant 4 : index
    %c0_14 = arith.constant 0 : index
    %19 = vector.load %arg8[%c4_13, %c0_14] : memref<8x128xf32, #tpu.memory_space<vmem>>, vector<1x128xf32>
    tpu.vector_store %arg8[%c4_13, %c0_14], %18 {strides = array<i32>} : memref<8x128xf32, #tpu.memory_space<vmem>>, vector<1x128xf32>,
    %c5 = arith.constant 5 : index
    %20 = memref.load %arg0[%c5] : memref<8xi32, #tpu.memory_space<smem>>
    %21 = arith.index_cast %20 : i32 to index
    %c0_15 = arith.constant 0 : index
    %22 = vector.load %arg1[%21, %c0_15] : memref<8x128xf32, #tpu.memory_space<vmem>>, vector<1x128xf32>
    %c5_16 = arith.constant 5 : index
    %c0_17 = arith.constant 0 : index
    %23 = vector.load %arg8[%c5_16, %c0_17] : memref<8x128xf32, #tpu.memory_space<vmem>>, vector<1x128xf32>
    tpu.vector_store %arg8[%c5_16, %c0_17], %22 {strides = array<i32>} : memref<8x128xf32, #tpu.memory_space<vmem>>, vector<1x128xf32>,
    %c6 = arith.constant 6 : index
    %24 = memref.load %arg0[%c6] : memref<8xi32, #tpu.memory_space<smem>>
    %25 = arith.index_cast %24 : i32 to index
    %c0_18 = arith.constant 0 : index
    %26 = vector.load %arg1[%25, %c0_18] : memref<8x128xf32, #tpu.memory_space<vmem>>, vector<1x128xf32>
    %c6_19 = arith.constant 6 : index
    %c0_20 = arith.constant 0 : index
    %27 = vector.load %arg8[%c6_19, %c0_20] : memref<8x128xf32, #tpu.memory_space<vmem>>, vector<1x128xf32>
    tpu.vector_store %arg8[%c6_19, %c0_20], %26 {strides = array<i32>} : memref<8x128xf32, #tpu.memory_space<vmem>>, vector<1x128xf32>,
    %c7 = arith.constant 7 : index
    %28 = memref.load %arg0[%c7] : memref<8xi32, #tpu.memory_space<smem>>
    %29 = arith.index_cast %28 : i32 to index
    %c0_21 = arith.constant 0 : index
    %30 = vector.load %arg1[%29, %c0_21] : memref<8x128xf32, #tpu.memory_space<vmem>>, vector<1x128xf32>
    %c7_22 = arith.constant 7 : index
    %c0_23 = arith.constant 0 : index
    %31 = vector.load %arg8[%c7_22, %c0_23] : memref<8x128xf32, #tpu.memory_space<vmem>>, vector<1x128xf32>
    tpu.vector_store %arg8[%c7_22, %c0_23], %30 {strides = array<i32>} : memref<8x128xf32, #tpu.memory_space<vmem>>, vector<1x128xf32>,
    %c0_24 = arith.constant 0 : index
    %c0_25 = arith.constant 0 : index
    %32 = vector.load %arg8[%c0_24, %c0_25] : memref<8x128xf32, #tpu.memory_space<vmem>>, vector<8x128xf32>
    %c0_26 = arith.constant 0 : index
    %c0_27 = arith.constant 0 : index
    %33 = vector.load %arg2[%c0_26, %c0_27] : memref<128x128xf32, #tpu.memory_space<vmem>>, vector<128x128xf32>
    %cst = arith.constant dense<0.000000e+00> : vector<8x128xf32>
    %34 = tpu.matmul %32, %33, %cst {dimension_numbers = #tpu.dot_dimension_numbers<[1], [0], [0], [1], [0, 0, 1, 1], [], []>} : vector<8x128xf32>, vector<128x128xf32>, vector<8x128xf32> -> vector<8x128xf32>
    %c0_28 = arith.constant 0 : index
    %c0_29 = arith.constant 0 : index
    %35 = vector.load %arg4[%c0_28, %c0_29] : memref<1x128xf32, #tpu.memory_space<vmem>>, vector<1x128xf32>
    %36 = vector.broadcast %35 : vector<1x128xf32> to vector<8x128xf32>
    %37 = arith.addf %34, %36 : vector<8x128xf32>
    %c0_30 = arith.constant 0 : index
    %c0_31 = arith.constant 0 : index
    %38 = vector.load %arg3[%c0_30, %c0_31] : memref<128x128xf32, #tpu.memory_space<vmem>>, vector<128x128xf32>
    %cst_32 = arith.constant 0.000000e+00 : f32
    %39 = vector.broadcast %cst_32 : f32 to vector<1x128xf32>
    %40 = vector.extract_strided_slice %37 {offsets = [0, 0], sizes = [1, 128], strides = [1, 1]} : vector<8x128xf32> to vector<1x128xf32>
    %cst_33 = arith.constant dense<0.000000e+00> : vector<1x128xf32>
    %41 = tpu.matmul %39, %38, %cst_33 {dimension_numbers = #tpu.dot_dimension_numbers<[1], [0], [0], [1], [0, 0, 1, 1], [], []>} : vector<1x128xf32>, vector<128x128xf32>, vector<1x128xf32> -> vector<1x128xf32>
    %42 = arith.addf %40, %41 : vector<1x128xf32>
    %43 = math.tanh %42 : vector<1x128xf32>
    %c0_34 = arith.constant 0 : index
    %c0_35 = arith.constant 0 : index
    %44 = vector.load %arg9[%c0_34, %c0_35] : memref<8x128xf32, #tpu.memory_space<vmem>>, vector<1x128xf32>
    tpu.vector_store %arg9[%c0_34, %c0_35], %43 {strides = array<i32>} : memref<8x128xf32, #tpu.memory_space<vmem>>, vector<1x128xf32>,
    %45 = vector.extract_strided_slice %37 {offsets = [1, 0], sizes = [1, 128], strides = [1, 1]} : vector<8x128xf32> to vector<1x128xf32>
    %cst_36 = arith.constant dense<0.000000e+00> : vector<1x128xf32>
    %46 = tpu.matmul %43, %38, %cst_36 {dimension_numbers = #tpu.dot_dimension_numbers<[1], [0], [0], [1], [0, 0, 1, 1], [], []>} : vector<1x128xf32>, vector<128x128xf32>, vector<1x128xf32> -> vector<1x128xf32>
    %47 = arith.addf %45, %46 : vector<1x128xf32>
    %48 = math.tanh %47 : vector<1x128xf32>
    %c1_37 = arith.constant 1 : index
    %c0_38 = arith.constant 0 : index
    %49 = vector.load %arg9[%c1_37, %c0_38] : memref<8x128xf32, #tpu.memory_space<vmem>>, vector<1x128xf32>
    tpu.vector_store %arg9[%c1_37, %c0_38], %48 {strides = array<i32>} : memref<8x128xf32, #tpu.memory_space<vmem>>, vector<1x128xf32>,
    %50 = vector.extract_strided_slice %37 {offsets = [2, 0], sizes = [1, 128], strides = [1, 1]} : vector<8x128xf32> to vector<1x128xf32>
    %cst_39 = arith.constant dense<0.000000e+00> : vector<1x128xf32>
    %51 = tpu.matmul %48, %38, %cst_39 {dimension_numbers = #tpu.dot_dimension_numbers<[1], [0], [0], [1], [0, 0, 1, 1], [], []>} : vector<1x128xf32>, vector<128x128xf32>, vector<1x128xf32> -> vector<1x128xf32>
    %52 = arith.addf %50, %51 : vector<1x128xf32>
    %53 = math.tanh %52 : vector<1x128xf32>
    %c2_40 = arith.constant 2 : index
    %c0_41 = arith.constant 0 : index
    %54 = vector.load %arg9[%c2_40, %c0_41] : memref<8x128xf32, #tpu.memory_space<vmem>>, vector<1x128xf32>
    tpu.vector_store %arg9[%c2_40, %c0_41], %53 {strides = array<i32>} : memref<8x128xf32, #tpu.memory_space<vmem>>, vector<1x128xf32>,
    %55 = vector.extract_strided_slice %37 {offsets = [3, 0], sizes = [1, 128], strides = [1, 1]} : vector<8x128xf32> to vector<1x128xf32>
    %cst_42 = arith.constant dense<0.000000e+00> : vector<1x128xf32>
    %56 = tpu.matmul %53, %38, %cst_42 {dimension_numbers = #tpu.dot_dimension_numbers<[1], [0], [0], [1], [0, 0, 1, 1], [], []>} : vector<1x128xf32>, vector<128x128xf32>, vector<1x128xf32> -> vector<1x128xf32>
    %57 = arith.addf %55, %56 : vector<1x128xf32>
    %58 = math.tanh %57 : vector<1x128xf32>
    %c3_43 = arith.constant 3 : index
    %c0_44 = arith.constant 0 : index
    %59 = vector.load %arg9[%c3_43, %c0_44] : memref<8x128xf32, #tpu.memory_space<vmem>>, vector<1x128xf32>
    tpu.vector_store %arg9[%c3_43, %c0_44], %58 {strides = array<i32>} : memref<8x128xf32, #tpu.memory_space<vmem>>, vector<1x128xf32>,
    %60 = vector.extract_strided_slice %37 {offsets = [4, 0], sizes = [1, 128], strides = [1, 1]} : vector<8x128xf32> to vector<1x128xf32>
    %cst_45 = arith.constant dense<0.000000e+00> : vector<1x128xf32>
    %61 = tpu.matmul %58, %38, %cst_45 {dimension_numbers = #tpu.dot_dimension_numbers<[1], [0], [0], [1], [0, 0, 1, 1], [], []>} : vector<1x128xf32>, vector<128x128xf32>, vector<1x128xf32> -> vector<1x128xf32>
    %62 = arith.addf %60, %61 : vector<1x128xf32>
    %63 = math.tanh %62 : vector<1x128xf32>
    %c4_46 = arith.constant 4 : index
    %c0_47 = arith.constant 0 : index
    %64 = vector.load %arg9[%c4_46, %c0_47] : memref<8x128xf32, #tpu.memory_space<vmem>>, vector<1x128xf32>
    tpu.vector_store %arg9[%c4_46, %c0_47], %63 {strides = array<i32>} : memref<8x128xf32, #tpu.memory_space<vmem>>, vector<1x128xf32>,
    %65 = vector.extract_strided_slice %37 {offsets = [5, 0], sizes = [1, 128], strides = [1, 1]} : vector<8x128xf32> to vector<1x128xf32>
    %cst_48 = arith.constant dense<0.000000e+00> : vector<1x128xf32>
    %66 = tpu.matmul %63, %38, %cst_48 {dimension_numbers = #tpu.dot_dimension_numbers<[1], [0], [0], [1], [0, 0, 1, 1], [], []>} : vector<1x128xf32>, vector<128x128xf32>, vector<1x128xf32> -> vector<1x128xf32>
    %67 = arith.addf %65, %66 : vector<1x128xf32>
    %68 = math.tanh %67 : vector<1x128xf32>
    %c5_49 = arith.constant 5 : index
    %c0_50 = arith.constant 0 : index
    %69 = vector.load %arg9[%c5_49, %c0_50] : memref<8x128xf32, #tpu.memory_space<vmem>>, vector<1x128xf32>
    tpu.vector_store %arg9[%c5_49, %c0_50], %68 {strides = array<i32>} : memref<8x128xf32, #tpu.memory_space<vmem>>, vector<1x128xf32>,
    %70 = vector.extract_strided_slice %37 {offsets = [6, 0], sizes = [1, 128], strides = [1, 1]} : vector<8x128xf32> to vector<1x128xf32>
    %cst_51 = arith.constant dense<0.000000e+00> : vector<1x128xf32>
    %71 = tpu.matmul %68, %38, %cst_51 {dimension_numbers = #tpu.dot_dimension_numbers<[1], [0], [0], [1], [0, 0, 1, 1], [], []>} : vector<1x128xf32>, vector<128x128xf32>, vector<1x128xf32> -> vector<1x128xf32>
    %72 = arith.addf %70, %71 : vector<1x128xf32>
    %73 = math.tanh %72 : vector<1x128xf32>
    %c6_52 = arith.constant 6 : index
    %c0_53 = arith.constant 0 : index
    %74 = vector.load %arg9[%c6_52, %c0_53] : memref<8x128xf32, #tpu.memory_space<vmem>>, vector<1x128xf32>
    tpu.vector_store %arg9[%c6_52, %c0_53], %73 {strides = array<i32>} : memref<8x128xf32, #tpu.memory_space<vmem>>, vector<1x128xf32>,
    %75 = vector.extract_strided_slice %37 {offsets = [7, 0], sizes = [1, 128], strides = [1, 1]} : vector<8x128xf32> to vector<1x128xf32>
    %cst_54 = arith.constant dense<0.000000e+00> : vector<1x128xf32>
    %76 = tpu.matmul %73, %38, %cst_54 {dimension_numbers = #tpu.dot_dimension_numbers<[1], [0], [0], [1], [0, 0, 1, 1], [], []>} : vector<1x128xf32>, vector<128x128xf32>, vector<1x128xf32> -> vector<1x128xf32>
    %77 = arith.addf %75, %76 : vector<1x128xf32>
    %78 = math.tanh %77 : vector<1x128xf32>
    %c7_55 = arith.constant 7 : index
    %c0_56 = arith.constant 0 : index
    %79 = vector.load %arg9[%c7_55, %c0_56] : memref<8x128xf32, #tpu.memory_space<vmem>>, vector<1x128xf32>
    tpu.vector_store %arg9[%c7_55, %c0_56], %78 {strides = array<i32>} : memref<8x128xf32, #tpu.memory_space<vmem>>, vector<1x128xf32>,
    %c0_57 = arith.constant 0 : index
    %c0_58 = arith.constant 0 : index
    %80 = vector.load %arg9[%c0_57, %c0_58] : memref<8x128xf32, #tpu.memory_space<vmem>>, vector<8x128xf32>
    %c0_59 = arith.constant 0 : index
    %c0_60 = arith.constant 0 : index
    %81 = vector.load %arg5[%c0_59, %c0_60] : memref<128x128xf32, #tpu.memory_space<vmem>>, vector<128x128xf32>
    %cst_61 = arith.constant dense<0.000000e+00> : vector<8x128xf32>
    %82 = tpu.matmul %80, %81, %cst_61 {dimension_numbers = #tpu.dot_dimension_numbers<[1], [0], [0], [1], [0, 0, 1, 1], [], []>} : vector<8x128xf32>, vector<128x128xf32>, vector<8x128xf32> -> vector<8x128xf32>
    %c0_62 = arith.constant 0 : index
    %c0_63 = arith.constant 0 : index
    %83 = vector.load %arg6[%c0_62, %c0_63] : memref<1x128xf32, #tpu.memory_space<vmem>>, vector<1x128xf32>
    %84 = vector.broadcast %83 : vector<1x128xf32> to vector<8x128xf32>
    %85 = arith.addf %82, %84 : vector<8x128xf32>
    %c0_64 = arith.constant 0 : index
    %c0_65 = arith.constant 0 : index
    %86 = vector.load %arg7[%c0_64, %c0_65] : memref<8x128xf32, #tpu.memory_space<vmem>>, vector<8x128xf32>
    tpu.vector_store %arg7[%c0_64, %c0_65], %85 {strides = array<i32>} : memref<8x128xf32, #tpu.memory_space<vmem>>, vector<8x128xf32>,
    return
  }
}

</mosaic_0001>

<llo_original>
// kernel: rnn_forward.1
$region0: #{rnn_forward.1}
  #allocation0 [shape = 'u32[]', space=smem, size = 0x4, offset = 0x4, fixed_abs, tag = 'smem constant byte address 0x4 - core index']
  #allocation1 [shape = 'u32[72,128]{1,0:T(1,128)}', space=vmem, size = 0x9000, scoped, tag = 'internal scratch']
  #allocation2 [shape = 'f32[8,128]{1,0:T(8,128)}', space=vmem, size = 0x1000, scoped, tag = 'scratch operand']
  #allocation3 [shape = 'f32[8,128]{1,0:T(8,128)}', space=vmem, size = 0x1000, scoped, tag = 'scratch operand']
  %s0 = inlined_call_operand.hbm [shape: s32[8], index: 0, kind: input, shape index: {}]
  %s1 = inlined_call_operand.hbm [shape: f32[8,128], index: 1, kind: input, shape index: {}]
  %s2 = inlined_call_operand.hbm [shape: f32[128,128], index: 2, kind: input, shape index: {}]
  %s3 = inlined_call_operand.hbm [shape: f32[128,128], index: 3, kind: input, shape index: {}]
  %s4 = inlined_call_operand.vmem [shape: f32[1,128], index: 4, kind: input, shape index: {}]
  %s5 = inlined_call_operand.hbm [shape: f32[128,128], index: 5, kind: input, shape index: {}]
  %s6 = inlined_call_operand.hbm [shape: f32[1,128], index: 6, kind: input, shape index: {}]
  %s7 = inlined_call_operand.hbm [shape: f32[8,128], index: 7, kind: output, shape index: {}]
  %s8 = sld [smem:[#allocation0]]
  $region62: #{rnn_forward.1} parent=0
    _
  %s10 = ssub.s32 1, %s8
  %s11 = scalar_select 0, %s10, %s8
  $region1: #{rnn_forward.1} parent=0
    #allocation4 [shape = 'u8[512]{0}', space=smem, size = 0x200, scoped, tag = 'input window, operand 0, single buffered']
    #allocation5 [shape = 's32[1]{0}', space=sflag, size = 0x4, scoped, tag = 'scoped memory for rnn_forward.1']
    #allocation6 [shape = 's32[1]{0}', space=sflag, size = 0x4, scoped, tag = 'scoped memory for rnn_forward.1']
    #allocation7 [shape = 's32[1]{0}', space=sflag, size = 0x4, scoped, tag = 'scoped memory for rnn_forward.1']
    #allocation8 [shape = 'u8[4096]{0}', space=vmem, size = 0x1000, scoped, tag = 'input window, operand 1, single buffered']
    #allocation9 [shape = 'u8[65536]{0}', space=vmem, size = 0x10000, scoped, tag = 'input window, operand 2, single buffered']
    #allocation10 [shape = 's32[1]{0}', space=sflag, size = 0x4, scoped, tag = 'scoped memory for rnn_forward.1']
    #allocation11 [shape = 'u8[65536]{0}', space=vmem, size = 0x10000, scoped, tag = 'input window, operand 3, single buffered']
    #allocation12 [shape = 'u8[65536]{0}', space=vmem, size = 0x10000, scoped, tag = 'input window, operand 5, single buffered']
    #allocation13 [shape = 's32[1]{0}', space=sflag, size = 0x4, scoped, tag = 'scoped memory for rnn_forward.1']
    #allocation14 [shape = 'u8[512]{0}', space=vmem, size = 0x400, scoped, tag = 'input window, operand 6, single buffered']
    #allocation15 [shape = 'u8[4096]{0}', space=vmem, size = 0x1000, scoped, tag = 'output window, operand 0, single buffered']
    %12 = vsyncpa [#allocation7], 0
    %13 = vsyncpa [#allocation5], 0
    %14 = vsyncpa [#allocation10], 0
    %15 = vsyncpa [#allocation13], 0
    %16 = vsyncpa [#allocation6], 0
    // Predicated region
    $region2: #{rnn_forward.1} parent=1 // pred_check
      _
    $region3: #{rnn_forward.1} parent=1 // pred_check_branch
      %18 = sbr.rel (0) target = $region5
    $region4: #{rnn_forward.1} parent=1 // pred_region
      %20 = vsyncadd [#allocation7], 0
      %s22 = sshll.u32 %s0, 4
      %s23 = int_to_ptr.hbm [resolvable:$true] %s22
      %25 = dma.hbm_to_smem %s23, 16, [#allocation4], [#allocation7]
    $region5: #{rnn_forward.1} parent=1 // pred_fallthru
      _
    // Predicated region
    $region6: #{rnn_forward.1} parent=1 // pred_check
      _
    $region7: #{rnn_forward.1} parent=1 // pred_check_branch
      %27 = sbr.rel (0) target = $region9
    $region8: #{rnn_forward.1} parent=1 // pred_region
      %29 = vsyncadd [#allocation5], 0
      %s31 = sshll.u32 %s1, 4
      %s32 = int_to_ptr.hbm [resolvable:$true] %s31
      %s33 = sshll.u32 [#allocation8], 4
      %s34 = int_to_ptr.vmem [resolvable:$true] %s33
      %36 = dma.hbm_to_vmem [thread:$0]  %s32, 128, %s34, [#allocation5]
    $region9: #{rnn_forward.1} parent=1 // pred_fallthru
      _
    // Predicated region
    $region10: #{rnn_forward.1} parent=1 // pred_check
      _
    $region11: #{rnn_forward.1} parent=1 // pred_check_branch
      %38 = sbr.rel (0) target = $region13
    $region12: #{rnn_forward.1} parent=1 // pred_region
      %40 = vsyncadd [#allocation10], 0
      %s41 = sshll.u32 %s2, 4
      %s42 = int_to_ptr.hbm [resolvable:$true] %s41
      %s43 = sshll.u32 [#allocation9], 4
      %s44 = int_to_ptr.vmem [resolvable:$true] %s43
      %49 = dma.hbm_to_vmem [thread:$0]  %s42, 2048, %s44, [#allocation10], 128, 128, 8
    $region13: #{rnn_forward.1} parent=1 // pred_fallthru
      _
    // Predicated region
    $region14: #{rnn_forward.1} parent=1 // pred_check
      _
    $region15: #{rnn_forward.1} parent=1 // pred_check_branch
      %51 = sbr.rel (0) target = $region17
    $region16: #{rnn_forward.1} parent=1 // pred_region
      %53 = vsyncadd [#allocation10], 0
      %s54 = sshll.u32 %s3, 4
      %s55 = int_to_ptr.hbm [resolvable:$true] %s54
      %s56 = sshll.u32 [#allocation11], 4
      %s57 = int_to_ptr.vmem [resolvable:$true] %s56
      %62 = dma.hbm_to_vmem [thread:$0]  %s55, 2048, %s57, [#allocation10], 128, 128, 8
    $region17: #{rnn_forward.1} parent=1 // pred_fallthru
      _
    // Predicated region
    $region18: #{rnn_forward.1} parent=1 // pred_check
      _
    $region19: #{rnn_forward.1} parent=1 // pred_check_branch
      %64 = sbr.rel (0) target = $region21
    $region20: #{rnn_forward.1} parent=1 // pred_region
      _
    $region21: #{rnn_forward.1} parent=1 // pred_fallthru
      _
    // Predicated region
    $region22: #{rnn_forward.1} parent=1 // pred_check
      _
    $region23: #{rnn_forward.1} parent=1 // pred_check_branch
      %66 = sbr.rel (0) target = $region25
    $region24: #{rnn_forward.1} parent=1 // pred_region
      %68 = vsyncadd [#allocation13], 0
      %s69 = sshll.u32 %s5, 4
      %s70 = int_to_ptr.hbm [resolvable:$true] %s69
      %s71 = sshll.u32 [#allocation12], 4
      %s72 = int_to_ptr.vmem [resolvable:$true] %s71
      %77 = dma.hbm_to_vmem [thread:$0]  %s70, 2048, %s72, [#allocation13], 128, 128, 8
    $region25: #{rnn_forward.1} parent=1 // pred_fallthru
      _
    // Predicated region
    $region26: #{rnn_forward.1} parent=1 // pred_check
      _
    $region27: #{rnn_forward.1} parent=1 // pred_check_branch
      %79 = sbr.rel (0) target = $region29
    $region28: #{rnn_forward.1} parent=1 // pred_region
      %81 = vsyncadd [#allocation13], 0
      %s83 = sshll.u32 %s6, 4
      %s84 = int_to_ptr.hbm [resolvable:$true] %s83
      %s85 = sshll.u32 [#allocation14], 4
      %s86 = int_to_ptr.vmem [resolvable:$true] %s85
      %88 = dma.hbm_to_vmem [thread:$0]  %s84, 16, %s86, [#allocation13]
    $region29: #{rnn_forward.1} parent=1 // pred_fallthru
      _
    // Predicated region
    $region30: #{rnn_forward.1} parent=1 // pred_check
      _
    $region31: #{rnn_forward.1} parent=1 // pred_check_branch
      %90 = sbr.rel (0) target = $region33
    $region32: #{rnn_forward.1} parent=1 // pred_region
      %92 = dma.done [#allocation7], 16
    $region33: #{rnn_forward.1} parent=1 // pred_fallthru
      _
    // Predicated region
    $region34: #{rnn_forward.1} parent=1 // pred_check
      _
    $region35: #{rnn_forward.1} parent=1 // pred_check_branch
      %94 = sbr.rel (0) target = $region37
    $region36: #{rnn_forward.1} parent=1 // pred_region
      %96 = dma.done [#allocation5], 128
    $region37: #{rnn_forward.1} parent=1 // pred_fallthru
      _
    // Predicated region
    $region38: #{rnn_forward.1} parent=1 // pred_check
      _
    $region39: #{rnn_forward.1} parent=1 // pred_check_branch
      %98 = sbr.rel (0) target = $region41
    $region40: #{rnn_forward.1} parent=1 // pred_region
      %100 = dma.done [#allocation10], 2048
    $region41: #{rnn_forward.1} parent=1 // pred_fallthru
      _
    // Predicated region
    $region42: #{rnn_forward.1} parent=1 // pred_check
      _
    $region43: #{rnn_forward.1} parent=1 // pred_check_branch
      %102 = sbr.rel (0) target = $region45
    $region44: #{rnn_forward.1} parent=1 // pred_region
      %104 = dma.done [#allocation10], 2048
    $region45: #{rnn_forward.1} parent=1 // pred_fallthru
      _
    // Predicated region
    $region46: #{rnn_forward.1} parent=1 // pred_check
      _
    $region47: #{rnn_forward.1} parent=1 // pred_check_branch
      %106 = sbr.rel (0) target = $region49
    $region48: #{rnn_forward.1} parent=1 // pred_region
      %108 = dma.done [#allocation13], 2048
    $region49: #{rnn_forward.1} parent=1 // pred_fallthru
      _
    // Predicated region
    $region50: #{rnn_forward.1} parent=1 // pred_check
      _
    $region51: #{rnn_forward.1} parent=1 // pred_check_branch
      %110 = sbr.rel (0) target = $region53
    $region52: #{rnn_forward.1} parent=1 // pred_region
      %112 = dma.done [#allocation13], 16
    $region53: #{rnn_forward.1} parent=1 // pred_fallthru
      _
    %113 = sfence
    %s114 = sld [smem:[#allocation4]]
    %s115 = scalar_lea.vmem [#allocation8], %s114
    %v116 = vld [vmem:[%s115] sm:$0x1]
    %117 = vst [vmem:[#allocation2] sm:$0x1] %v116
    %s118 = sld [smem:[#allocation4 + $0x1]]
    %s119 = scalar_lea.vmem [#allocation8], %s118
    %v120 = vld [vmem:[%s119] sm:$0x1]
    %121 = vst [vmem:[#allocation2 + $0x1] sm:$0x1] %v120
    %s122 = sld [smem:[#allocation4 + $0x2]]
    %s123 = scalar_lea.vmem [#allocation8], %s122
    %v124 = vld [vmem:[%s123] sm:$0x1]
    %125 = vst [vmem:[#allocation2 + $0x2] sm:$0x1] %v124
    %s126 = sld [smem:[#allocation4 + $0x3]]
    %s127 = scalar_lea.vmem [#allocation8], %s126
    %v128 = vld [vmem:[%s127] sm:$0x1]
    %129 = vst [vmem:[#allocation2 + $0x3] sm:$0x1] %v128
    %s130 = sld [smem:[#allocation4 + $0x4]]
    %s131 = scalar_lea.vmem [#allocation8], %s130
    %v132 = vld [vmem:[%s131] sm:$0x1]
    %133 = vst [vmem:[#allocation2 + $0x4] sm:$0x1] %v132
    %s134 = sld [smem:[#allocation4 + $0x5]]
    %s135 = scalar_lea.vmem [#allocation8], %s134
    %v136 = vld [vmem:[%s135] sm:$0x1]
    %137 = vst [vmem:[#allocation2 + $0x5] sm:$0x1] %v136
    %s138 = sld [smem:[#allocation4 + $0x6]]
    %s139 = scalar_lea.vmem [#allocation8], %s138
    %v140 = vld [vmem:[%s139] sm:$0x1]
    %141 = vst [vmem:[#allocation2 + $0x6] sm:$0x1] %v140
    %s142 = sld [smem:[#allocation4 + $0x7]]
    %s143 = scalar_lea.vmem [#allocation8], %s142
    %v144 = vld [vmem:[%s143] sm:$0x1]
    %145 = vst [vmem:[#allocation2 + $0x7] sm:$0x1] %v144
    %v146 = vld [vmem:[#allocation2] sm:$0xff]
    %v147 = vld [vmem:[#allocation9] sm:$0xff]
    %v148 = vld [vmem:[#allocation9 + $0x8] sm:$0xff]
    %v149 = vld [vmem:[#allocation9 + $0x10] sm:$0xff]
    %v150 = vld [vmem:[#allocation9 + $0x18] sm:$0xff]
    %v151 = vld [vmem:[#allocation9 + $0x20] sm:$0xff]
    %v152 = vld [vmem:[#allocation9 + $0x28] sm:$0xff]
    %v153 = vld [vmem:[#allocation9 + $0x30] sm:$0xff]
    %v154 = vld [vmem:[#allocation9 + $0x38] sm:$0xff]
    %v155 = vld [vmem:[#allocation9 + $0x40] sm:$0xff]
    %v156 = vld [vmem:[#allocation9 + $0x48] sm:$0xff]
    %v157 = vld [vmem:[#allocation9 + $0x50] sm:$0xff]
    %v158 = vld [vmem:[#allocation9 + $0x58] sm:$0xff]
    %v159 = vld [vmem:[#allocation9 + $0x60] sm:$0xff]
    %v160 = vld [vmem:[#allocation9 + $0x68] sm:$0xff]
    %v161 = vld [vmem:[#allocation9 + $0x70] sm:$0xff]
    %v162 = vld [vmem:[#allocation9 + $0x78] sm:$0xff]
    %v163 = vld [vmem:[%s4] sm:$0x1]
    %v165 = vperm.slane %v163, 0
    %167 = vmatpush.msra.mxu0 %v162
    %168 = vmatpush.msra.mxu0 %v161
    %169 = vmatpush.msra.mxu0 %v160
    %170 = vmatpush.msra.mxu0 %v159
    %171 = vmatpush.msra.mxu0 %v158
    %172 = vmatpush.msra.mxu0 %v157
    %173 = vmatpush.msra.mxu0 %v156
    %174 = vmatpush.msra.mxu0 %v155
    %175 = vmatpush.msra.mxu0 %v154
    %176 = vmatpush.msra.mxu0 %v153
    %177 = vmatpush.msra.mxu0 %v152
    %178 = vmatpush.msra.mxu0 %v151
    %179 = vmatpush.msra.mxu0 %v150
    %180 = vmatpush.msra.mxu0 %v149
    %181 = vmatpush.msra.mxu0 %v148
    %182 = vmatpush.msra.mxu0 %v147
    %183 = vmatmul.f32.gmra.mxu0 %v146
    %v184 = vpop.f32.mrf.mxu0
    %v185 = vadd.f32 %v165, %v184
    %186 = vdwg.mxu0
    %v187 = vld [vmem:[#allocation11] sm:$0xff]
    %v188 = vld [vmem:[#allocation11 + $0x8] sm:$0xff]
    %v189 = vld [vmem:[#allocation11 + $0x10] sm:$0xff]
    %v190 = vld [vmem:[#allocation11 + $0x18] sm:$0xff]
    %v191 = vld [vmem:[#allocation11 + $0x20] sm:$0xff]
    %v192 = vld [vmem:[#allocation11 + $0x28] sm:$0xff]
    %v193 = vld [vmem:[#allocation11 + $0x30] sm:$0xff]
    %v194 = vld [vmem:[#allocation11 + $0x38] sm:$0xff]
    %v195 = vld [vmem:[#allocation11 + $0x40] sm:$0xff]
    %v196 = vld [vmem:[#allocation11 + $0x48] sm:$0xff]
    %v197 = vld [vmem:[#allocation11 + $0x50] sm:$0xff]
    %v198 = vld [vmem:[#allocation11 + $0x58] sm:$0xff]
    %v199 = vld [vmem:[#allocation11 + $0x60] sm:$0xff]
    %v200 = vld [vmem:[#allocation11 + $0x68] sm:$0xff]
    %v201 = vld [vmem:[#allocation11 + $0x70] sm:$0xff]
    %v202 = vld [vmem:[#allocation11 + $0x78] sm:$0xff]
    %203 = vmatpush.msra.mxu0 %v202
    %204 = vmatpush.msra.mxu0 %v201
    %205 = vmatpush.msra.mxu0 %v200
    %206 = vmatpush.msra.mxu0 %v199
    %207 = vmatpush.msra.mxu0 %v198
    %208 = vmatpush.msra.mxu0 %v197
    %209 = vmatpush.msra.mxu0 %v196
    %210 = vmatpush.msra.mxu0 %v195
    %211 = vmatpush.msra.mxu0 %v194
    %212 = vmatpush.msra.mxu0 %v193
    %213 = vmatpush.msra.mxu0 %v192
    %214 = vmatpush.msra.mxu0 %v191
    %215 = vmatpush.msra.mxu0 %v190
    %216 = vmatpush.msra.mxu0 %v189
    %217 = vmatpush.msra.mxu0 %v188
    %218 = vmatpush.msra.mxu0 %v187
    %219 = vmatmul.f32.gmra.mxu0 0.0
    %v220 = vpop.f32.mrf.mxu0
    %v221 = vadd.f32 0.0, %v220
    %222 = vdwg.mxu0
    %v223 = vadd.f32 %v185, %v221
    %v224 = vtanh.pop %v223
    %225 = vst [vmem:[#allocation3] sm:$0x1] %v224
    %226 = vmatpush.msra.mxu0 %v202
    %227 = vmatpush.msra.mxu0 %v201
    %228 = vmatpush.msra.mxu0 %v200
    %229 = vmatpush.msra.mxu0 %v199
    %230 = vmatpush.msra.mxu0 %v198
    %231 = vmatpush.msra.mxu0 %v197
    %232 = vmatpush.msra.mxu0 %v196
    %233 = vmatpush.msra.mxu0 %v195
    %234 = vmatpush.msra.mxu0 %v194
    %235 = vmatpush.msra.mxu0 %v193
    %236 = vmatpush.msra.mxu0 %v192
    %237 = vmatpush.msra.mxu0 %v191
    %238 = vmatpush.msra.mxu0 %v190
    %239 = vmatpush.msra.mxu0 %v189
    %240 = vmatpush.msra.mxu0 %v188
    %241 = vmatpush.msra.mxu0 %v187
    %242 = vmatmul.f32.gmra.mxu0 %v224
    %v243 = vpop.f32.mrf.mxu0
    %v244 = vadd.f32 0.0, %v243
    %245 = vdwg.mxu0
    %v247 = vrot.slane %v244, 7
    %v249 = vadd.f32 %v185, %v247
    %v250 = vtanh.pop %v249
    %251 = vst [vmem:[#allocation3] sm:$0x2] %v250
    %v253 = vrot.slane %v250, 1
    %255 = vmatpush.msra.mxu0 %v202
    %256 = vmatpush.msra.mxu0 %v201
    %257 = vmatpush.msra.mxu0 %v200
    %258 = vmatpush.msra.mxu0 %v199
    %259 = vmatpush.msra.mxu0 %v198
    %260 = vmatpush.msra.mxu0 %v197
    %261 = vmatpush.msra.mxu0 %v196
    %262 = vmatpush.msra.mxu0 %v195
    %263 = vmatpush.msra.mxu0 %v194
    %264 = vmatpush.msra.mxu0 %v193
    %265 = vmatpush.msra.mxu0 %v192
    %266 = vmatpush.msra.mxu0 %v191
    %267 = vmatpush.msra.mxu0 %v190
    %268 = vmatpush.msra.mxu0 %v189
    %269 = vmatpush.msra.mxu0 %v188
    %270 = vmatpush.msra.mxu0 %v187
    %271 = vmatmul.f32.gmra.mxu0 %v253
    %v272 = vpop.f32.mrf.mxu0
    %v273 = vadd.f32 0.0, %v272
    %274 = vdwg.mxu0
    %v276 = vrot.slane %v273, 6
    %v278 = vadd.f32 %v185, %v276
    %v279 = vtanh.pop %v278
    %280 = vst [vmem:[#allocation3] sm:$0x4] %v279
    %v282 = vrot.slane %v279, 2
    %284 = vmatpush.msra.mxu0 %v202
    %285 = vmatpush.msra.mxu0 %v201
    %286 = vmatpush.msra.mxu0 %v200
    %287 = vmatpush.msra.mxu0 %v199
    %288 = vmatpush.msra.mxu0 %v198
    %289 = vmatpush.msra.mxu0 %v197
    %290 = vmatpush.msra.mxu0 %v196
    %291 = vmatpush.msra.mxu0 %v195
    %292 = vmatpush.msra.mxu0 %v194
    %293 = vmatpush.msra.mxu0 %v193
    %294 = vmatpush.msra.mxu0 %v192
    %295 = vmatpush.msra.mxu0 %v191
    %296 = vmatpush.msra.mxu0 %v190
    %297 = vmatpush.msra.mxu0 %v189
    %298 = vmatpush.msra.mxu0 %v188
    %299 = vmatpush.msra.mxu0 %v187
    %300 = vmatmul.f32.gmra.mxu0 %v282
    %v301 = vpop.f32.mrf.mxu0
    %v302 = vadd.f32 0.0, %v301
    %303 = vdwg.mxu0
    %v305 = vrot.slane %v302, 5
    %v307 = vadd.f32 %v185, %v305
    %v308 = vtanh.pop %v307
    %309 = vst [vmem:[#allocation3] sm:$0x8] %v308
    %v311 = vrot.slane %v308, 3
    %313 = vmatpush.msra.mxu0 %v202
    %314 = vmatpush.msra.mxu0 %v201
    %315 = vmatpush.msra.mxu0 %v200
    %316 = vmatpush.msra.mxu0 %v199
    %317 = vmatpush.msra.mxu0 %v198
    %318 = vmatpush.msra.mxu0 %v197
    %319 = vmatpush.msra.mxu0 %v196
    %320 = vmatpush.msra.mxu0 %v195
    %321 = vmatpush.msra.mxu0 %v194
    %322 = vmatpush.msra.mxu0 %v193
    %323 = vmatpush.msra.mxu0 %v192
    %324 = vmatpush.msra.mxu0 %v191
    %325 = vmatpush.msra.mxu0 %v190
    %326 = vmatpush.msra.mxu0 %v189
    %327 = vmatpush.msra.mxu0 %v188
    %328 = vmatpush.msra.mxu0 %v187
    %329 = vmatmul.f32.gmra.mxu0 %v311
    %v330 = vpop.f32.mrf.mxu0
    %v331 = vadd.f32 0.0, %v330
    %332 = vdwg.mxu0
    %v334 = vrot.slane %v331, 4
    %v336 = vadd.f32 %v185, %v334
    %v337 = vtanh.pop %v336
    %338 = vst [vmem:[#allocation3] sm:$0x10] %v337
    %v340 = vrot.slane %v337, 4
    %342 = vmatpush.msra.mxu0 %v202
    %343 = vmatpush.msra.mxu0 %v201
    %344 = vmatpush.msra.mxu0 %v200
    %345 = vmatpush.msra.mxu0 %v199
    %346 = vmatpush.msra.mxu0 %v198
    %347 = vmatpush.msra.mxu0 %v197
    %348 = vmatpush.msra.mxu0 %v196
    %349 = vmatpush.msra.mxu0 %v195
    %350 = vmatpush.msra.mxu0 %v194
    %351 = vmatpush.msra.mxu0 %v193
    %352 = vmatpush.msra.mxu0 %v192
    %353 = vmatpush.msra.mxu0 %v191
    %354 = vmatpush.msra.mxu0 %v190
    %355 = vmatpush.msra.mxu0 %v189
    %356 = vmatpush.msra.mxu0 %v188
    %357 = vmatpush.msra.mxu0 %v187
    %358 = vmatmul.f32.gmra.mxu0 %v340
    %v359 = vpop.f32.mrf.mxu0
    %v360 = vadd.f32 0.0, %v359
    %361 = vdwg.mxu0
    %v363 = vrot.slane %v360, 3
    %v365 = vadd.f32 %v185, %v363
    %v366 = vtanh.pop %v365
    %367 = vst [vmem:[#allocation3] sm:$0x20] %v366
    %v369 = vrot.slane %v366, 5
    %371 = vmatpush.msra.mxu0 %v202
    %372 = vmatpush.msra.mxu0 %v201
    %373 = vmatpush.msra.mxu0 %v200
    %374 = vmatpush.msra.mxu0 %v199
    %375 = vmatpush.msra.mxu0 %v198
    %376 = vmatpush.msra.mxu0 %v197
    %377 = vmatpush.msra.mxu0 %v196
    %378 = vmatpush.msra.mxu0 %v195
    %379 = vmatpush.msra.mxu0 %v194
    %380 = vmatpush.msra.mxu0 %v193
    %381 = vmatpush.msra.mxu0 %v192
    %382 = vmatpush.msra.mxu0 %v191
    %383 = vmatpush.msra.mxu0 %v190
    %384 = vmatpush.msra.mxu0 %v189
    %385 = vmatpush.msra.mxu0 %v188
    %386 = vmatpush.msra.mxu0 %v187
    %387 = vmatmul.f32.gmra.mxu0 %v369
    %v388 = vpop.f32.mrf.mxu0
    %v389 = vadd.f32 0.0, %v388
    %390 = vdwg.mxu0
    %v392 = vrot.slane %v389, 2
    %v394 = vadd.f32 %v185, %v392
    %v395 = vtanh.pop %v394
    %396 = vst [vmem:[#allocation3] sm:$0x40] %v395
    %v398 = vrot.slane %v395, 6
    %400 = vmatpush.msra.mxu0 %v202
    %401 = vmatpush.msra.mxu0 %v201
    %402 = vmatpush.msra.mxu0 %v200
    %403 = vmatpush.msra.mxu0 %v199
    %404 = vmatpush.msra.mxu0 %v198
    %405 = vmatpush.msra.mxu0 %v197
    %406 = vmatpush.msra.mxu0 %v196
    %407 = vmatpush.msra.mxu0 %v195
    %408 = vmatpush.msra.mxu0 %v194
    %409 = vmatpush.msra.mxu0 %v193
    %410 = vmatpush.msra.mxu0 %v192
    %411 = vmatpush.msra.mxu0 %v191
    %412 = vmatpush.msra.mxu0 %v190
    %413 = vmatpush.msra.mxu0 %v189
    %414 = vmatpush.msra.mxu0 %v188
    %415 = vmatpush.msra.mxu0 %v187
    %416 = vmatmul.f32.gmra.mxu0 %v398
    %v417 = vpop.f32.mrf.mxu0
    %v418 = vadd.f32 0.0, %v417
    %419 = vdwg.mxu0
    %v421 = vrot.slane %v418, 1
    %v423 = vadd.f32 %v185, %v421
    %v424 = vtanh.pop %v423
    %425 = vst [vmem:[#allocation3] sm:$0x80] %v424
    %v426 = vld [vmem:[#allocation3] sm:$0xff]
    %v427 = vld [vmem:[#allocation12] sm:$0xff]
    %v428 = vld [vmem:[#allocation12 + $0x8] sm:$0xff]
    %v429 = vld [vmem:[#allocation12 + $0x10] sm:$0xff]
    %v430 = vld [vmem:[#allocation12 + $0x18] sm:$0xff]
    %v431 = vld [vmem:[#allocation12 + $0x20] sm:$0xff]
    %v432 = vld [vmem:[#allocation12 + $0x28] sm:$0xff]
    %v433 = vld [vmem:[#allocation12 + $0x30] sm:$0xff]
    %v434 = vld [vmem:[#allocation12 + $0x38] sm:$0xff]
    %v435 = vld [vmem:[#allocation12 + $0x40] sm:$0xff]
    %v436 = vld [vmem:[#allocation12 + $0x48] sm:$0xff]
    %v437 = vld [vmem:[#allocation12 + $0x50] sm:$0xff]
    %v438 = vld [vmem:[#allocation12 + $0x58] sm:$0xff]
    %v439 = vld [vmem:[#allocation12 + $0x60] sm:$0xff]
    %v440 = vld [vmem:[#allocation12 + $0x68] sm:$0xff]
    %v441 = vld [vmem:[#allocation12 + $0x70] sm:$0xff]
    %v442 = vld [vmem:[#allocation12 + $0x78] sm:$0xff]
    %v443 = vld [vmem:[#allocation14] sm:$0x1]
    %v445 = vperm.slane %v443, 0
    %447 = vmatpush.msra.mxu0 %v442
    %448 = vmatpush.msra.mxu0 %v441
    %449 = vmatpush.msra.mxu0 %v440
    %450 = vmatpush.msra.mxu0 %v439
    %451 = vmatpush.msra.mxu0 %v438
    %452 = vmatpush.msra.mxu0 %v437
    %453 = vmatpush.msra.mxu0 %v436
    %454 = vmatpush.msra.mxu0 %v435
    %455 = vmatpush.msra.mxu0 %v434
    %456 = vmatpush.msra.mxu0 %v433
    %457 = vmatpush.msra.mxu0 %v432
    %458 = vmatpush.msra.mxu0 %v431
    %459 = vmatpush.msra.mxu0 %v430
    %460 = vmatpush.msra.mxu0 %v429
    %461 = vmatpush.msra.mxu0 %v428
    %462 = vmatpush.msra.mxu0 %v427
    %463 = vmatmul.f32.gmra.mxu0 %v426
    %v464 = vpop.f32.mrf.mxu0
    %v465 = vadd.f32 %v445, %v464
    %466 = vdwg.mxu0
    %467 = vst [vmem:[#allocation15] sm:$0xff] %v465
    // Predicated region
    $region54: #{rnn_forward.1} parent=1 // pred_check
      _
    $region55: #{rnn_forward.1} parent=1 // pred_check_branch
      %469 = sbr.rel (0) target = $region57
    $region56: #{rnn_forward.1} parent=1 // pred_region
      %471 = vsyncadd [#allocation6], 0
      %s473 = sshll.u32 [#allocation15], 4
      %s474 = int_to_ptr.vmem [resolvable:$true] %s473
      %s475 = sshll.u32 %s7, 4
      %s476 = int_to_ptr.hbm [resolvable:$true] %s475
      %478 = dma.vmem_to_hbm [thread:$0]  %s474, 128, %s476, [#allocation6]
    $region57: #{rnn_forward.1} parent=1 // pred_fallthru
      _
    // Predicated region
    $region58: #{rnn_forward.1} parent=1 // pred_check
      _
    $region59: #{rnn_forward.1} parent=1 // pred_check_branch
      %480 = sbr.rel (0) target = $region61
    $region60: #{rnn_forward.1} parent=1 // pred_region
      %482 = dma.done [#allocation6], 128
    $region61: #{rnn_forward.1} parent=1 // pred_fallthru
      _
    %483 = vsyncpa [#allocation5], 1
    %484 = vsyncpa [#allocation10], 1
    %485 = vsyncpa [#allocation13], 1
    %486 = vsyncpa [#allocation6], 1
    %487 = vsyncpa [#allocation7], 1

</llo_original>
